<compile_context>
chip_gen: v5e
topology: v5e:2x2
jax: 0.10.0
libtpu: 0.0.40
codegen_flags: <defaults>
</compile_context>

<pallas_src>
import numpy as np
import jax
import jax.numpy as jnp
from jax import lax
from jax.experimental import pallas as pl
from jax.experimental.pallas import tpu as pltpu


# ---------------------------------------------------------------------------
# Host-side constant: scatter pattern that turns the 9 conv taps into a
# (16, 16) matrix acting on the unpadded flattened (B, 16) input.
# Output column ordering:  col = member*4 + window  with
#   window = wh*2 + ww   (row-major 2x2 pooling windows == PyTorch flatten order)
#   member = di*2 + dj   (position inside the 2x2 pooling window)
# so MaxPool2d(2,2) == elementwise max over the four 4-lane slices.
# ---------------------------------------------------------------------------
def _conv_pool_pattern():
    S = np.zeros((9, 16, 16), np.float32)
    for wh in range(2):
        for ww in range(2):
            window = wh * 2 + ww
            for di in range(2):
                for dj in range(2):
                    member = di * 2 + dj
                    col = member * 4 + window
                    i, j = 2 * wh + di, 2 * ww + dj          # conv output position
                    for ki in range(3):
                        for kj in range(3):
                            r, c = i + ki - 1, j + kj - 1    # input pixel (padding=1)
                            if 0 <= r < 4 and 0 <= c < 4:
                                S[ki * 3 + kj, r * 4 + c, col] = 1.0
    return S


_CONV_POOL_PATTERN = jnp.asarray(_conv_pool_pattern())       # (9, 16, 16) constant


def cnn_kernel(x_ref, cmat_ref, bconv_ref, wlin_ref, blin_ref, out_ref):
    """Fused forward: conv3x3(pad=1) -> LeakyReLU(0.2) -> MaxPool2x2 -> Linear(4,2) -> Tanh.

    x_ref    : (Bb, 16) f32 VMEM   -- flattened, unpadded 4x4 inputs (lane-dense)
    cmat_ref : (16, 16) f32 VMEM   -- precomputed conv matrix (pool-friendly column order)
    bconv_ref: (1,)     f32 SMEM   -- conv bias
    wlin_ref : (4, 2)   f32 VMEM   -- linear weight, pre-transposed
    blin_ref : (1, 2)   f32 VMEM   -- linear bias
    out_ref  : (Bb, 2)  f32 VMEM
    """
    # Conv2d as a single lane-dense matmul (padding folded into cmat).
    y = jnp.dot(x_ref[...], cmat_ref[...], preferred_element_type=jnp.float32)
    y = y + bconv_ref[0]

    # LeakyReLU(0.2) -- pure VPU.
    y = jnp.where(y > 0, y, 0.2 * y)                          # (Bb, 16)

    # MaxPool2d(2,2): columns are member*4 + window -> elementwise max over four
    # lane slices; result is already in PyTorch flatten order of the 2x2 map.
    p = jnp.maximum(jnp.maximum(y[:, 0:4], y[:, 4:8]),
                    jnp.maximum(y[:, 8:12], y[:, 12:16]))     # (Bb, 4)

    # Linear(4, 2) + Tanh.
    logits = jnp.dot(p, wlin_ref[...], preferred_element_type=jnp.float32) + blin_ref[...]
    out_ref[...] = jnp.tanh(logits)


def cnn_forward(x, w_conv, b_conv, w_lin, b_lin, *, block_b=1024):
    """x: (B, 1, 4, 4) f32 NCHW -> (B, 2) f32."""
    B = x.shape[0]
    x_flat = x.reshape(B, 16).astype(jnp.float32)             # free contiguous reshape, no pad

    # Fold the 9 conv taps into the (16, 16) matrix (tiny one-time einsum).
    cmat = jnp.einsum("k,kpc->pc",
                      w_conv.reshape(9).astype(jnp.float32), _CONV_POOL_PATTERN)

    bconv = b_conv.reshape(1).astype(jnp.float32)
    wlin_t = w_lin.T.astype(jnp.float32)                      # (4, 2)
    blin = b_lin.reshape(1, 2).astype(jnp.float32)

    # Sublane-aligned batch tile (multiple of 8 when tiled; full B when small).
    bb = B if B <= block_b else block_b
    grid = (pl.cdiv(B, bb),)

    return pl.pallas_call(
        cnn_kernel,
        out_shape=jax.ShapeDtypeStruct((B, 2), jnp.float32),
        grid=grid,
        in_specs=[
            pl.BlockSpec((bb, 16), lambda i: (i, 0)),          # batched input tiles (pipelined)
            pl.BlockSpec((16, 16), lambda i: (0, 0)),          # conv matrix (VMEM-resident)
            pl.BlockSpec(memory_space=pltpu.SMEM),             # conv bias scalar
            pl.BlockSpec((4, 2), lambda i: (0, 0)),            # linear weight
            pl.BlockSpec((1, 2), lambda i: (0, 0)),            # linear bias
        ],
        out_specs=pl.BlockSpec((bb, 2), lambda i: (i, 0)),
        compiler_params=pltpu.CompilerParams(
            dimension_semantics=("parallel",)),                # batch split across TCs on v7x
    )(x_flat, cmat, bconv, wlin_t, blin)


def cnn_reference(x, w_conv, b_conv, w_lin, b_lin):
    """Pure-JAX/XLA reference for verification."""
    conv = lax.conv_general_dilated(
        x, w_conv, window_strides=(1, 1), padding=((1, 1), (1, 1)),
        dimension_numbers=("NCHW", "OIHW", "NCHW")) + b_conv.reshape(1, 1, 1, 1)
    act = jnp.where(conv > 0, conv, 0.2 * conv)
    pooled = lax.reduce_window(act, -jnp.inf, lax.max,
                               window_dimensions=(1, 1, 2, 2),
                               window_strides=(1, 1, 2, 2),
                               padding="VALID")
    feat = pooled.reshape(x.shape[0], -1)
    return jnp.tanh(feat @ w_lin.T + b_lin)


if __name__ == "__main__":
    key = jax.random.PRNGKey(0)
    k_x, k_wc, k_bc, k_wl, k_bl = jax.random.split(key, 5)

    # Parameters (shapes match nn.Conv2d(1,1,3) and nn.Linear(4,2)).
    w_conv = jax.random.normal(k_wc, (1, 1, 3, 3), dtype=jnp.float32) * 0.3
    b_conv = jax.random.normal(k_bc, (1,), dtype=jnp.float32) * 0.1
    w_lin = jax.random.normal(k_wl, (2, 4), dtype=jnp.float32) * 0.5
    b_lin = jax.random.normal(k_bl, (2,), dtype=jnp.float32) * 0.1

    # Small-shape check (batch=2, single block).
    x_small = jax.random.normal(k_x, (2, 1, 4, 4), dtype=jnp.float32)
    out_small = jax.block_until_ready(cnn_forward(x_small, w_conv, b_conv, w_lin, b_lin))
    ref_small = cnn_reference(x_small, w_conv, b_conv, w_lin, b_lin)
    assert out_small.shape == (2, 2)
    assert jnp.allclose(out_small, ref_small, atol=1e-4, rtol=1e-4), (out_small, ref_small)

    # Larger batch exercising the pipelined batch grid (4 x 1024-row blocks).
    x_big = jax.random.normal(k_x, (4096, 1, 4, 4), dtype=jnp.float32)
    out_big = jax.block_until_ready(cnn_forward(x_big, w_conv, b_conv, w_lin, b_lin))
    ref_big = cnn_reference(x_big, w_conv, b_conv, w_lin, b_lin)
    assert out_big.shape == (4096, 2)
    assert jnp.allclose(out_big, ref_big, atol=1e-4, rtol=1e-4)

    print("KERNEL_OK")
</pallas_src>

<mosaic_0001>
module attributes {stable_mosaic.version = 11 : i64} {
  func.func @cnn_kernel(%arg0: i32, %arg1: memref<2x16xf32, #tpu.memory_space<vmem>>, %arg2: memref<16x16xf32, #tpu.memory_space<vmem>>, %arg3: memref<1xf32, #tpu.memory_space<smem>>, %arg4: memref<4x2xf32, #tpu.memory_space<vmem>>, %arg5: memref<1x2xf32, #tpu.memory_space<vmem>>, %arg6: memref<2x2xf32, #tpu.memory_space<vmem>>) attributes {dimension_semantics = [#tpu.dimension_semantics<parallel>], iteration_bounds = array<i64: 1>, scalar_prefetch = 0 : i64, scratch_operands = 0 : i64, tpu.core_type = #tpu.core_type<tc>, window_params = [{transform_indices = @transform_0, window_bounds = array<i64: 2, 16>}, {pipeline_mode = #tpu.pipeline_mode<synchronous>, transform_indices = @transform_1, window_bounds = array<i64: 16, 16>}, {transform_indices = @transform_2, window_bounds = array<i64: 1>}, {pipeline_mode = #tpu.pipeline_mode<synchronous>, transform_indices = @transform_3, window_bounds = array<i64: 4, 2>}, {pipeline_mode = #tpu.pipeline_mode<synchronous>, transform_indices = @transform_4, window_bounds = array<i64: 1, 2>}, {transform_indices = @transform_5, window_bounds = array<i64: 2, 2>}]} {
    %c0 = arith.constant 0 : index
    %c0_0 = arith.constant 0 : index
    %0 = vector.load %arg1[%c0, %c0_0] : memref<2x16xf32, #tpu.memory_space<vmem>>, vector<2x16xf32>
    %c0_1 = arith.constant 0 : index
    %c0_2 = arith.constant 0 : index
    %1 = vector.load %arg2[%c0_1, %c0_2] : memref<16x16xf32, #tpu.memory_space<vmem>>, vector<16x16xf32>
    %cst = arith.constant dense<0.000000e+00> : vector<2x16xf32>
    %2 = tpu.matmul %0, %1, %cst {dimension_numbers = #tpu.dot_dimension_numbers<[1], [0], [0], [1], [0, 0, 1, 1], [], []>} : vector<2x16xf32>, vector<16x16xf32>, vector<2x16xf32> -> vector<2x16xf32>
    %c0_3 = arith.constant 0 : index
    %3 = memref.load %arg3[%c0_3] : memref<1xf32, #tpu.memory_space<smem>>
    %4 = vector.broadcast %3 : f32 to vector<2x16xf32>
    %5 = arith.addf %2, %4 : vector<2x16xf32>
    %cst_4 = arith.constant 0.000000e+00 : f32
    %6 = vector.broadcast %cst_4 : f32 to vector<2x16xf32>
    %7 = arith.cmpf ogt, %5, %6 : vector<2x16xf32>
    %cst_5 = arith.constant 2.000000e-01 : f32
    %8 = vector.broadcast %cst_5 : f32 to vector<2x16xf32>
    %9 = arith.mulf %8, %5 : vector<2x16xf32>
    %10 = arith.select %7, %5, %9 : vector<2x16xi1>, vector<2x16xf32>
    %11 = vector.extract_strided_slice %10 {offsets = [0, 0], sizes = [2, 4], strides = [1, 1]} : vector<2x16xf32> to vector<2x4xf32>
    %12 = vector.extract_strided_slice %10 {offsets = [0, 4], sizes = [2, 4], strides = [1, 1]} : vector<2x16xf32> to vector<2x4xf32>
    %13 = arith.maximumf %11, %12 : vector<2x4xf32>
    %14 = vector.extract_strided_slice %10 {offsets = [0, 8], sizes = [2, 4], strides = [1, 1]} : vector<2x16xf32> to vector<2x4xf32>
    %15 = vector.extract_strided_slice %10 {offsets = [0, 12], sizes = [2, 4], strides = [1, 1]} : vector<2x16xf32> to vector<2x4xf32>
    %16 = arith.maximumf %14, %15 : vector<2x4xf32>
    %17 = arith.maximumf %13, %16 : vector<2x4xf32>
    %c0_6 = arith.constant 0 : index
    %c0_7 = arith.constant 0 : index
    %18 = vector.load %arg4[%c0_6, %c0_7] : memref<4x2xf32, #tpu.memory_space<vmem>>, vector<4x2xf32>
    %cst_8 = arith.constant dense<0.000000e+00> : vector<2x2xf32>
    %19 = tpu.matmul %17, %18, %cst_8 {dimension_numbers = #tpu.dot_dimension_numbers<[1], [0], [0], [1], [0, 0, 1, 1], [], []>} : vector<2x4xf32>, vector<4x2xf32>, vector<2x2xf32> -> vector<2x2xf32>
    %c0_9 = arith.constant 0 : index
    %c0_10 = arith.constant 0 : index
    %20 = vector.load %arg5[%c0_9, %c0_10] : memref<1x2xf32, #tpu.memory_space<vmem>>, vector<1x2xf32>
    %21 = vector.broadcast %20 : vector<1x2xf32> to vector<2x2xf32>
    %22 = arith.addf %19, %21 : vector<2x2xf32>
    %23 = math.tanh %22 : vector<2x2xf32>
    %c0_11 = arith.constant 0 : index
    %c0_12 = arith.constant 0 : index
    %24 = vector.load %arg6[%c0_11, %c0_12] : memref<2x2xf32, #tpu.memory_space<vmem>>, vector<2x2xf32>
    tpu.vector_store %arg6[%c0_11, %c0_12], %23 {strides = array<i32>} : memref<2x2xf32, #tpu.memory_space<vmem>>, vector<2x2xf32>,
    return
  }
  func.func @transform_0(%arg0: i32) -> (i32, i32) {
    %c0_i32 = arith.constant 0 : i32
    %c0_i32_0 = arith.constant 0 : i32
    return %arg0, %c0_i32 : i32, i32
  }
  func.func @transform_1(%arg0: i32) -> (i32, i32) {
    %c0_i32 = arith.constant 0 : i32
    %c0_i32_0 = arith.constant 0 : i32
    %c0_i32_1 = arith.constant 0 : i32
    return %c0_i32, %c0_i32_0 : i32, i32
  }
  func.func @transform_2(%arg0: i32) -> i32 {
    %c0_i32 = arith.constant 0 : i32
    %c0_i32_0 = arith.constant 0 : i32
    return %c0_i32 : i32
  }
  func.func @transform_3(%arg0: i32) -> (i32, i32) {
    %c0_i32 = arith.constant 0 : i32
    %c0_i32_0 = arith.constant 0 : i32
    %c0_i32_1 = arith.constant 0 : i32
    return %c0_i32, %c0_i32_0 : i32, i32
  }
  func.func @transform_4(%arg0: i32) -> (i32, i32) {
    %c0_i32 = arith.constant 0 : i32
    %c0_i32_0 = arith.constant 0 : i32
    %c0_i32_1 = arith.constant 0 : i32
    return %c0_i32, %c0_i32_0 : i32, i32
  }
  func.func @transform_5(%arg0: i32) -> (i32, i32) {
    %c0_i32 = arith.constant 0 : i32
    %c0_i32_0 = arith.constant 0 : i32
    return %arg0, %c0_i32 : i32, i32
  }
}

</mosaic_0001>

<llo_original>
// kernel: tpu_custom_call.1
$region0: #{tpu_custom_call.1}
  #allocation0 [shape = 'u32[]', space=smem, size = 0x4, offset = 0x4, fixed_abs, tag = 'smem constant byte address 0x4 - core index']
  #allocation1 [shape = 'u32[72,128]{1,0:T(1,128)}', space=vmem, size = 0x9000, scoped, tag = 'internal scratch']
  #allocation2 [shape = 'f32[1]{0:T(128)S(6)}', space=smem, size = 0x200, scoped, tag = 'scoped memory for tpu_custom_call.1']
  %s0 = inlined_call_operand.vmem [shape: f32[2,16], index: 0, kind: input, shape index: {}]
  %s1 = inlined_call_operand.hbm [shape: f32[16,16], index: 1, kind: input, shape index: {}]
  %s2 = inlined_call_operand.<no memory space> [shape: f32[1], index: 2, kind: input, shape index: {}]
  %s3 = inlined_call_operand.vmem [shape: f32[4,2], index: 3, kind: input, shape index: {}]
  %s4 = inlined_call_operand.vmem [shape: f32[1,2], index: 4, kind: input, shape index: {}]
  %s5 = inlined_call_operand.hbm [shape: f32[2,2], index: 5, kind: output, shape index: {}]
  %s6 = sld [smem:[#allocation0]]
  $region34: #{tpu_custom_call.1} parent=0
    _
  %s8 = ssub.s32 1, %s6
  %s9 = scalar_select 0, %s8, %s6
  %10 = sst [smem:[#allocation2]] %s2
  $region1: #{tpu_custom_call.1} parent=0
    #allocation3 [shape = 'u8[8192]{0}', space=vmem, size = 0x2000, scoped, tag = 'input window, operand 1, single buffered']
    #allocation4 [shape = 's32[1]{0}', space=sflag, size = 0x4, scoped, tag = 'scoped memory for tpu_custom_call.1']
    #allocation5 [shape = 's32[1]{0}', space=sflag, size = 0x4, scoped, tag = 'scoped memory for tpu_custom_call.1']
    #allocation6 [shape = 'u8[1024]{0}', space=vmem, size = 0x400, scoped, tag = 'output window, operand 0, single buffered']
    %11 = vsyncpa [#allocation4], 0
    %12 = vsyncpa [#allocation5], 0
    // Predicated region
    $region2: #{tpu_custom_call.1} parent=1 // pred_check
      _
    $region3: #{tpu_custom_call.1} parent=1 // pred_check_branch
      %14 = sbr.rel (0) target = $region5
    $region4: #{tpu_custom_call.1} parent=1 // pred_region
      _
    $region5: #{tpu_custom_call.1} parent=1 // pred_fallthru
      _
    // Predicated region
    $region6: #{tpu_custom_call.1} parent=1 // pred_check
      _
    $region7: #{tpu_custom_call.1} parent=1 // pred_check_branch
      %16 = sbr.rel (0) target = $region9
    $region8: #{tpu_custom_call.1} parent=1 // pred_region
      %18 = vsyncadd [#allocation4], 0
      %s19 = sshll.u32 %s1, 4
      %s20 = int_to_ptr.hbm [resolvable:$true] %s19
      %s21 = sshll.u32 [#allocation3], 4
      %s22 = int_to_ptr.vmem [resolvable:$true] %s21
      %27 = dma.hbm_to_vmem [thread:$0]  %s20, 256, %s22, [#allocation4], 128, 128, 8
    $region9: #{tpu_custom_call.1} parent=1 // pred_fallthru
      _
    // Predicated region
    $region10: #{tpu_custom_call.1} parent=1 // pred_check
      _
    $region11: #{tpu_custom_call.1} parent=1 // pred_check_branch
      %29 = sbr.rel (0) target = $region13
    $region12: #{tpu_custom_call.1} parent=1 // pred_region
      _
    $region13: #{tpu_custom_call.1} parent=1 // pred_fallthru
      _
    // Predicated region
    $region14: #{tpu_custom_call.1} parent=1 // pred_check
      _
    $region15: #{tpu_custom_call.1} parent=1 // pred_check_branch
      %31 = sbr.rel (0) target = $region17
    $region16: #{tpu_custom_call.1} parent=1 // pred_region
      _
    $region17: #{tpu_custom_call.1} parent=1 // pred_fallthru
      _
    // Predicated region
    $region18: #{tpu_custom_call.1} parent=1 // pred_check
      _
    $region19: #{tpu_custom_call.1} parent=1 // pred_check_branch
      %33 = sbr.rel (0) target = $region21
    $region20: #{tpu_custom_call.1} parent=1 // pred_region
      _
    $region21: #{tpu_custom_call.1} parent=1 // pred_fallthru
      _
    // Predicated region
    $region22: #{tpu_custom_call.1} parent=1 // pred_check
      _
    $region23: #{tpu_custom_call.1} parent=1 // pred_check_branch
      %35 = sbr.rel (0) target = $region25
    $region24: #{tpu_custom_call.1} parent=1 // pred_region
      %37 = dma.done [#allocation4], 256
    $region25: #{tpu_custom_call.1} parent=1 // pred_fallthru
      _
    %v38 = vld [vmem:[%s0] sm:$0x3]
    %v39 = vld [vmem:[#allocation3] sm:$0xff]
    %v40 = vld [vmem:[#allocation3 + $0x8] sm:$0xff]
    %s41 = sld [smem:[#allocation2]]
    %v42 = vstv %s41
    %vm43 = vcmask 130048
    %v45 = vsel %vm43, %v38, 0
    %47 = vmatpush.msra.mxu0 0.0
    %48 = vmatpush.msra.mxu0 0.0
    %49 = vmatpush.msra.mxu0 0.0
    %50 = vmatpush.msra.mxu0 0.0
    %51 = vmatpush.msra.mxu0 0.0
    %52 = vmatpush.msra.mxu0 0.0
    %53 = vmatpush.msra.mxu0 0.0
    %54 = vmatpush.msra.mxu0 0.0
    %55 = vmatpush.msra.mxu0 0.0
    %56 = vmatpush.msra.mxu0 0.0
    %57 = vmatpush.msra.mxu0 0.0
    %58 = vmatpush.msra.mxu0 0.0
    %59 = vmatpush.msra.mxu0 0.0
    %60 = vmatpush.msra.mxu0 0.0
    %61 = vmatpush.msra.mxu0 %v40
    %62 = vmatpush.msra.mxu0 %v39
    %63 = vmatmul.f32.gmra.mxu0 %v45
    %v64 = vpop.f32.mrf.mxu0
    %v65 = vadd.f32 %v42, %v64
    %66 = vdwg.mxu0
    %vm67 = vcmp.gt.f32.partialorder %v65, 0.0
    %v68 = vmul.f32 %v65, 0.2
    %v69 = vsel %vm67, %v65, %v68
    %71 = vrot.lane.b32.xlu0 %v69, 124
    %v72 = vpop.permute.xlu0 %71
    %v74 = vmax.f32 %v69, %v72
    %76 = vrot.lane.b32.xlu0 %v74, 120
    %v77 = vpop.permute.xlu0 %76
    %v79 = vmax.f32 %v74, %v77
    %v80 = vld [vmem:[%s3] sm:$0xf]
    %v81 = vld [vmem:[%s4] sm:$0x1]
    %v83 = vperm.slane %v81, 0
    %vm85 = vcmask 31744
    %v87 = vsel %vm85, %v79, 0
    %vm89 = vcmask 1043456
    %v91 = vsel %vm89, %v80, 0
    %93 = vmatpush.msra.mxu0 0.0
    %94 = vmatpush.msra.mxu0 0.0
    %95 = vmatpush.msra.mxu0 0.0
    %96 = vmatpush.msra.mxu0 0.0
    %97 = vmatpush.msra.mxu0 0.0
    %98 = vmatpush.msra.mxu0 0.0
    %99 = vmatpush.msra.mxu0 0.0
    %100 = vmatpush.msra.mxu0 0.0
    %101 = vmatpush.msra.mxu0 0.0
    %102 = vmatpush.msra.mxu0 0.0
    %103 = vmatpush.msra.mxu0 0.0
    %104 = vmatpush.msra.mxu0 0.0
    %105 = vmatpush.msra.mxu0 0.0
    %106 = vmatpush.msra.mxu0 0.0
    %107 = vmatpush.msra.mxu0 0.0
    %108 = vmatpush.msra.mxu0 %v91
    %109 = vmatmul.f32.gmra.mxu0 %v87
    %v110 = vpop.f32.mrf.mxu0
    %v111 = vadd.f32 %v83, %v110
    %112 = vdwg.mxu0
    %v113 = vtanh.pop %v111
    %vm114 = vcmask 9216
    %115 = vst.msk [vmem:[#allocation6] sm:$0x3] %vm114, %v113
    // Predicated region
    $region26: #{tpu_custom_call.1} parent=1 // pred_check
      _
    $region27: #{tpu_custom_call.1} parent=1 // pred_check_branch
      %117 = sbr.rel (0) target = $region29
    $region28: #{tpu_custom_call.1} parent=1 // pred_region
      %119 = vsyncadd [#allocation5], 0
      %s121 = sshll.u32 [#allocation6], 4
      %s122 = int_to_ptr.vmem [resolvable:$true] %s121
      %s123 = sshll.u32 %s5, 4
      %s124 = int_to_ptr.hbm [resolvable:$true] %s123
      %126 = dma.vmem_to_hbm [thread:$0]  %s122, 32, %s124, [#allocation5]
    $region29: #{tpu_custom_call.1} parent=1 // pred_fallthru
      _
    // Predicated region
    $region30: #{tpu_custom_call.1} parent=1 // pred_check
      _
    $region31: #{tpu_custom_call.1} parent=1 // pred_check_branch
      %128 = sbr.rel (0) target = $region33
    $region32: #{tpu_custom_call.1} parent=1 // pred_region
      %130 = dma.done [#allocation5], 32
    $region33: #{tpu_custom_call.1} parent=1 // pred_fallthru
      _
    %131 = vsyncpa [#allocation4], 1
    %132 = vsyncpa [#allocation5], 1

</llo_original>
